<compile_context>
chip_gen: v7x
topology: tpu7x:2x2x1
jax: 0.10.0
libtpu: 0.0.40
codegen_flags: <defaults>
</compile_context>

<pallas_src>
import numpy as np

import jax
import jax.numpy as jnp
from jax.experimental import pallas as pl
from jax.experimental.pallas import tpu as pltpu


# ----------------------------------------------------------------------------
# Primary path: no-op kernel, output aliases input, refs never leave HBM.
# ----------------------------------------------------------------------------
def _identity_alias_kernel(x_ref, o_ref):
    # Output aliases input (input_output_aliases={0: 0}); the data already
    # lives in the output buffer, so the body issues no DMA and no compute.
    del x_ref, o_ref


def _identity_alias(x):
    return pl.pallas_call(
        _identity_alias_kernel,
        out_shape=jax.ShapeDtypeStruct(x.shape, x.dtype),
        in_specs=[pl.BlockSpec(memory_space=pl.ANY)],
        out_specs=pl.BlockSpec(memory_space=pl.ANY),
        input_output_aliases={0: 0},
        compiler_params=pltpu.CompilerParams(has_side_effects=True),
        cost_estimate=pl.CostEstimate(flops=0, transcendentals=0, bytes_accessed=0),
    )(x)


# ----------------------------------------------------------------------------
# Fallback path: previously-validated lane-dense tiled copy (proven to lower).
# ----------------------------------------------------------------------------
_LANES = 512            # lane width: multiple of 128 -> unmasked stores
_MAX_BLOCK_ROWS = 1024  # 1024 * 512 * 4B = 2 MiB per f32 block (v7x/v5e-safe)


def _identity_copy_kernel(x_ref, o_ref):
    o_ref[...] = x_ref[...]


def _identity_copy(x):
    orig_shape = x.shape
    n = x.size
    flat = x.reshape(-1)

    lanes = _LANES
    rows = pl.cdiv(n, lanes)

    if rows <= _MAX_BLOCK_ROWS:
        # Single full-extent block: legal regardless of (8, 128) divisibility.
        block_rows = rows
    else:
        block_rows = _MAX_BLOCK_ROWS
        rows = ((rows + block_rows - 1) // block_rows) * block_rows

    padded = rows * lanes
    if padded != n:
        flat = jnp.pad(flat, (0, padded - n))
    x2d = flat.reshape(rows, lanes)

    out2d = pl.pallas_call(
        _identity_copy_kernel,
        out_shape=jax.ShapeDtypeStruct((rows, lanes), x2d.dtype),
        grid_spec=pl.GridSpec(
            grid=(rows // block_rows,),
            in_specs=[pl.BlockSpec((block_rows, lanes), lambda i: (i, 0))],
            out_specs=pl.BlockSpec((block_rows, lanes), lambda i: (i, 0)),
        ),
        compiler_params=pltpu.CompilerParams(
            dimension_semantics=("parallel",),
        ),
        cost_estimate=pl.CostEstimate(
            flops=0,
            transcendentals=0,
            bytes_accessed=2 * x2d.size * x2d.dtype.itemsize,
        ),
    )(x2d)

    if padded != n:
        return out2d.reshape(-1)[:n].reshape(orig_shape)
    return out2d.reshape(orig_shape)


# ----------------------------------------------------------------------------
# Public wrapper.
# ----------------------------------------------------------------------------
def identity_forward(x):
    """Pallas implementation of Model().forward(X) == X."""
    if x.size == 0:
        return x
    try:
        return _identity_alias(x)
    except Exception:
        # TODO(synk): drop this fallback once the no-op/alias (pl.ANY) path is
        # confirmed to lower on every deployed TPU generation.
        return _identity_copy(x)


if __name__ == "__main__":
    key = jax.random.PRNGKey(0)
    # Small NCHW-style input consistent with a generic module input.
    x = jax.random.normal(key, (2, 4, 16, 16), dtype=jnp.float32)

    # Snapshot to host before the kernel runs (the output aliases the kernel's
    # operand buffer; the caller-visible `x` stays valid without donation, but
    # snapshotting keeps the check independent of aliasing behavior).
    x_host = np.asarray(jax.device_get(x))

    y = identity_forward(x)
    y = jax.block_until_ready(y)

    assert y.shape == x_host.shape, (y.shape, x_host.shape)
    assert y.dtype == x_host.dtype, (y.dtype, x_host.dtype)
    assert np.array_equal(np.asarray(jax.device_get(y)), x_host), (
        "identity kernel output mismatch"
    )

    print("KERNEL_OK")
</pallas_src>

<mosaic_0001>
module attributes {stable_mosaic.version = 11 : i64} {
  func.func @_identity_alias_kernel(%arg0: memref<2x4x16x16xf32, #tpu.memory_space<any>>, %arg1: memref<2x4x16x16xf32, #tpu.memory_space<any>>) attributes {dimension_semantics = [], scalar_prefetch = 0 : i64, scratch_operands = 0 : i64, tpu.core_type = #tpu.core_type<tc>} {
    return
  }
}

module attributes {stable_mosaic.version = 11 : i64} {
  func.func @_identity_copy_kernel(%arg0: i32, %arg1: memref<4x512xf32, #tpu.memory_space<vmem>>, %arg2: memref<4x512xf32, #tpu.memory_space<vmem>>) attributes {dimension_semantics = [#tpu.dimension_semantics<parallel>], iteration_bounds = array<i64: 1>, scalar_prefetch = 0 : i64, scratch_operands = 0 : i64, tpu.core_type = #tpu.core_type<tc>, window_params = [{transform_indices = @transform_0, window_bounds = array<i64: 4, 512>}, {transform_indices = @transform_1, window_bounds = array<i64: 4, 512>}]} {
    %c0 = arith.constant 0 : index
    %c0_0 = arith.constant 0 : index
    %0 = vector.load %arg1[%c0, %c0_0] : memref<4x512xf32, #tpu.memory_space<vmem>>, vector<4x512xf32>
    %c0_1 = arith.constant 0 : index
    %c0_2 = arith.constant 0 : index
    %1 = vector.load %arg2[%c0_1, %c0_2] : memref<4x512xf32, #tpu.memory_space<vmem>>, vector<4x512xf32>
    tpu.vector_store %arg2[%c0_1, %c0_2], %0 {strides = array<i32>} : memref<4x512xf32, #tpu.memory_space<vmem>>, vector<4x512xf32>,
    return
  }
  func.func @transform_0(%arg0: i32) -> (i32, i32) {
    %c0_i32 = arith.constant 0 : i32
    %c0_i32_0 = arith.constant 0 : i32
    return %arg0, %c0_i32 : i32, i32
  }
  func.func @transform_1(%arg0: i32) -> (i32, i32) {
    %c0_i32 = arith.constant 0 : i32
    %c0_i32_0 = arith.constant 0 : i32
    return %arg0, %c0_i32 : i32, i32
  }
}

</mosaic_0001>

<llo_original>
// kernel: tpu_custom_call.1
$region0: #{tpu_custom_call.1}
  #allocation0 [shape = 'u32[]', space=smem, size = 0x4, offset = 0x4, fixed_abs, tag = 'smem constant byte address 0x4 - core index']
  #allocation1 [shape = 'u32[144,128]{1,0:T(1,128)}', space=vmem, size = 0x12000, scoped, tag = 'internal scratch']
  %s0 = inlined_call_operand.hbm [shape: f32[2,4,16,16], index: 0, kind: input, shape index: {}, may-alias: {0,1}]
  %s1 = inlined_call_operand.hbm [shape: f32[2,4,16,16], index: 1, kind: output, shape index: {}, may-alias: {0,1}]
  %s2 = sld [smem:[#allocation0]]
  $region2: #{tpu_custom_call.1} parent=0
    _
  %s4 = ssub.s32 1, %s2
  %s5 = scalar_select 0, %s4, %s2

// kernel: tpu_custom_call.1
$region0: #{tpu_custom_call.1}
  #allocation0 [shape = 'u32[]', space=smem, size = 0x4, offset = 0x4, fixed_abs, tag = 'smem constant byte address 0x4 - core index']
  #allocation1 [shape = 'u32[144,128]{1,0:T(1,128)}', space=vmem, size = 0x12000, scoped, tag = 'internal scratch']
  %s0 = inlined_call_operand.hbm [shape: f32[4,512], index: 0, kind: input, shape index: {}]
  %s1 = inlined_call_operand.hbm [shape: f32[4,512], index: 1, kind: output, shape index: {}]
  %s2 = sld [smem:[#allocation0]]
  $region18: #{tpu_custom_call.1} parent=0
    _
  %s4 = ssub.s32 1, %s2
  %s5 = scalar_select 0, %s4, %s2
  $region1: #{tpu_custom_call.1} parent=0
    #allocation2 [shape = 'u8[8192]{0}', space=vmem, size = 0x2000, scoped, tag = 'input window, operand 0, single buffered']
    #allocation3 [shape = 's32[1]{0}', space=sflag, size = 0x4, scoped, tag = 'scoped memory for tpu_custom_call.1']
    #allocation4 [shape = 's32[1]{0}', space=sflag, size = 0x4, scoped, tag = 'scoped memory for tpu_custom_call.1']
    #allocation5 [shape = 'u8[8192]{0}', space=vmem, size = 0x2000, scoped, tag = 'output window, operand 0, single buffered']
    %6 = vsyncpa [#allocation3], 0
    %7 = vsyncpa [#allocation4], 0
    // Predicated region
    $region2: #{tpu_custom_call.1} parent=1 // pred_check
      _
    $region3: #{tpu_custom_call.1} parent=1 // pred_check_branch
      %9 = sbr.rel (0) target = $region5
    $region4: #{tpu_custom_call.1} parent=1 // pred_region
      %s11 = ssub.s32 256, 256
      %12 = vsyncadd [#allocation3], %s11
      %s14 = sshll.u32 [#allocation2], 4
      %s15 = int_to_ptr.vmem [resolvable:$true] %s14
      %17 = dma.hbm_to_vmem [thread:$0]  %s0, 256, %s15, [#allocation3]
    $region5: #{tpu_custom_call.1} parent=1 // pred_fallthru
      _
    // Predicated region
    $region6: #{tpu_custom_call.1} parent=1 // pred_check
      _
    $region7: #{tpu_custom_call.1} parent=1 // pred_check_branch
      %19 = sbr.rel (0) target = $region9
    $region8: #{tpu_custom_call.1} parent=1 // pred_region
      %20 = dma.done [#allocation3], 256
    $region9: #{tpu_custom_call.1} parent=1 // pred_fallthru
      _
    %v21 = vld [vmem:[#allocation2] sm:$0xff]
    %v22 = vld [vmem:[#allocation2 + $0x8] sm:$0xff]
    %23 = vst [vmem:[#allocation5] sm:$0xff] %v21
    %24 = vst [vmem:[#allocation5 + $0x8] sm:$0xff] %v22
    // Predicated region
    $region10: #{tpu_custom_call.1} parent=1 // pred_check
      _
    $region11: #{tpu_custom_call.1} parent=1 // pred_check_branch
      %26 = sbr.rel (0) target = $region13
    $region12: #{tpu_custom_call.1} parent=1 // pred_region
      %s28 = ssub.s32 256, 256
      %29 = vsyncadd [#allocation4], %s28
      %s31 = sshll.u32 [#allocation5], 4
      %s32 = int_to_ptr.vmem [resolvable:$true] %s31
      %34 = dma.vmem_to_hbm [thread:$0]  %s32, 256, %s1, [#allocation4]
    $region13: #{tpu_custom_call.1} parent=1 // pred_fallthru
      _
    // Predicated region
    $region14: #{tpu_custom_call.1} parent=1 // pred_check
      _
    $region15: #{tpu_custom_call.1} parent=1 // pred_check_branch
      %36 = sbr.rel (0) target = $region17
    $region16: #{tpu_custom_call.1} parent=1 // pred_region
      %37 = dma.done [#allocation4], 256
    $region17: #{tpu_custom_call.1} parent=1 // pred_fallthru
      _
    %38 = vsyncpa [#allocation3], 1
    %39 = vsyncpa [#allocation4], 1

</llo_original>
